<compile_context>
chip_gen: v5e
topology: v5e:2x2
jax: 0.10.0
libtpu: 0.0.40
codegen_flags: <defaults>
</compile_context>

<pallas_src>
import jax
import jax.numpy as jnp
import numpy as np
from jax.experimental import pallas as pl
from jax.experimental.pallas import tpu as pltpu


def _round_up(x, m):
    return ((x + m - 1) // m) * m


# ------------------------------ Pallas kernel -------------------------------

def _gcn_kernel(a_ref, hwt_ref, b_ref, out_ref, acc_ref):
    # a_ref   : [tile_n, tile_k] bf16 adjacency tile (A[v, u] = #edges u -> v)
    # hwt_ref : [tile_k, dpad]   f32  (H @ W.T) K-tile, lane-dense width
    # b_ref   : [1, dpad]        f32  bias (grid-invariant)
    # out_ref : [tile_n, dpad]   f32
    # acc_ref : [tile_n, dpad]   f32 VMEM accumulator (persists across K steps)
    k = pl.program_id(1)

    @pl.when(k == 0)
    def _():
        acc_ref[...] = jnp.zeros_like(acc_ref)

    # bf16 adjacency values are exact small integers; accumulate in f32.
    acc_ref[...] += jnp.dot(a_ref[...].astype(jnp.float32), hwt_ref[...],
                            preferred_element_type=jnp.float32)

    @pl.when(k == pl.num_programs(1) - 1)
    def _():
        out_ref[...] = acc_ref[...] + b_ref[...]


# --------------------------------- wrapper -----------------------------------

def gcn_layer(adj, feature, W, b):
    """out = adj @ (feature @ W.T) + b  with the big matmul in one pallas_call.

    adj must be the dense in-adjacency: adj[v, u] = #edges u -> v (edge
    multiplicities <= 256 so they are exact in bf16).
    """
    N, din = feature.shape
    dout = W.shape[0]

    # Per-generation budget: v7x has 64 MiB physical VMEM, v5e/v6e 128 MiB.
    try:
        vmem_cap = pltpu.get_tpu_info().vmem_capacity_bytes
    except Exception:  # conservative fallback
        vmem_cap = 64 * 1024 * 1024
    big_vmem = vmem_cap >= 96 * 1024 * 1024
    vmem_limit = int(min(vmem_cap * 3 // 4, 100 * 1024 * 1024))

    tile_n_target = 512 if big_vmem else 256     # node-row tile
    tile_k_target = 4096 if big_vmem else 2048   # contraction (neighbor) tile

    dpad = _round_up(dout, 128)                  # lane-dense output width

    # Pad N so the chosen tiles divide it exactly (K-padding must be real zeros
    # so padded chunks contribute exactly zero to valid output rows).
    npad0 = _round_up(N, 128)
    if npad0 >= tile_k_target:
        npad = _round_up(N, tile_k_target)
        tile_k = tile_k_target
    else:
        npad = npad0
        tile_k = npad0
    tile_n = min(tile_n_target, npad)
    while npad % tile_n != 0:                    # npad is a multiple of 128
        tile_n -= 128

    # --- one-time staging in plain JAX (reviewer-recommended re-association) ---
    # Tiny [N, Din] @ [Din, Dout] projection; the O(N^2) work stays in Pallas.
    hwt = jnp.zeros((npad, dpad), jnp.float32).at[:N, :dout].set(
        feature.astype(jnp.float32) @ W.T.astype(jnp.float32))
    a_p = (jnp.zeros((npad, npad), jnp.bfloat16)
           .at[:N, :N].set(adj.astype(jnp.bfloat16)))   # bf16: exact edge counts
    bp = jnp.zeros((1, dpad), jnp.float32).at[:, :dout].set(b)

    grid = (npad // tile_n, npad // tile_k)

    out = pl.pallas_call(
        _gcn_kernel,
        out_shape=jax.ShapeDtypeStruct((npad, dpad), jnp.float32),
        grid_spec=pltpu.PrefetchScalarGridSpec(
            num_scalar_prefetch=0,
            grid=grid,
            in_specs=[
                # adjacency tile: streams O(N^2) bf16, double-buffered
                pl.BlockSpec((tile_n, tile_k), lambda i, k: (i, k)),
                # projected features: depends only on k
                pl.BlockSpec((tile_k, dpad), lambda i, k: (k, 0)),
                # bias: grid-invariant -> single buffer
                pl.BlockSpec((1, dpad), lambda i, k: (0, 0),
                             pipeline_mode=pl.Buffered(1)),
            ],
            out_specs=pl.BlockSpec((tile_n, dpad), lambda i, k: (i, 0)),
            scratch_shapes=[pltpu.VMEM((tile_n, dpad), jnp.float32)],
        ),
        compiler_params=pltpu.CompilerParams(
            # node-tile axis independent; K axis is the reduction (accumulator)
            dimension_semantics=("parallel", "arbitrary"),
            vmem_limit_bytes=vmem_limit,
        ),
    )(a_p, hwt, bp)

    return out[:N, :dout]


# ----------------------------- pure-JAX reference ----------------------------

def gcn_reference(feature, src, dst, W, b):
    agg = jnp.zeros_like(feature).at[dst].add(feature[src])   # copy_u + sum
    return agg @ W.T + b                                      # nn.Linear


# ----------------------------------- main ------------------------------------

if __name__ == "__main__":
    key = jax.random.PRNGKey(0)
    k_src, k_dst, k_feat, k_w, k_b = jax.random.split(key, 5)

    # Small synthetic graph / features.
    N, E = 16, 48
    in_feats, out_feats = 8, 32

    src = jax.random.randint(k_src, (E,), 0, N)
    dst = jax.random.randint(k_dst, (E,), 0, N)
    feature = jax.random.normal(k_feat, (N, in_feats), jnp.float32)

    # nn.Linear-style init: U(-1/sqrt(fan_in), 1/sqrt(fan_in)).
    bound = 1.0 / np.sqrt(in_feats)
    W = jax.random.uniform(k_w, (out_feats, in_feats), jnp.float32, -bound, bound)
    b = jax.random.uniform(k_b, (out_feats,), jnp.float32, -bound, bound)

    # Dense in-adjacency with edge multiplicity: A[v, u] = #edges u -> v.
    adj = jnp.zeros((N, N), jnp.float32).at[dst, src].add(1.0)

    out = jax.block_until_ready(gcn_layer(adj, feature, W, b))

    ref = gcn_reference(feature, src, dst, W, b)
    if not np.allclose(np.asarray(out), np.asarray(ref), rtol=1e-5, atol=1e-5):
        raise AssertionError("Pallas GCNLayer output mismatch vs reference")

    print("KERNEL_OK")
</pallas_src>

<mosaic_0001>
module attributes {stable_mosaic.version = 11 : i64} {
  func.func @_gcn_kernel(%arg0: i32, %arg1: i32, %arg2: memref<128x128xbf16, #tpu.memory_space<vmem>>, %arg3: memref<128x128xf32, #tpu.memory_space<vmem>>, %arg4: memref<1x128xf32, #tpu.memory_space<vmem>>, %arg5: memref<128x128xf32, #tpu.memory_space<vmem>>, %arg6: memref<128x128xf32, #tpu.memory_space<vmem>>) attributes {dimension_semantics = [#tpu.dimension_semantics<parallel>, #tpu.dimension_semantics<arbitrary>], iteration_bounds = array<i64: 1, 1>, scalar_prefetch = 0 : i64, scratch_operands = 1 : i64, tpu.core_type = #tpu.core_type<tc>, window_params = [{transform_indices = @transform_0, window_bounds = array<i64: 128, 128>}, {transform_indices = @transform_1, window_bounds = array<i64: 128, 128>}, {pipeline_mode = #tpu.pipeline_mode<synchronous>, transform_indices = @transform_2, window_bounds = array<i64: 1, 128>}, {transform_indices = @transform_3, window_bounds = array<i64: 128, 128>}]} {
    %c0_i32 = arith.constant 0 : i32
    %0 = arith.cmpi eq, %arg1, %c0_i32 : i32
    %1 = arith.extui %0 : i1 to i32
    %c0_i32_0 = arith.constant 0 : i32
    %2 = arith.cmpi ne, %1, %c0_i32_0 : i32
    scf.if %2 {
      %cst_10 = arith.constant 0.000000e+00 : f32
      %13 = vector.broadcast %cst_10 : f32 to vector<128x128xf32>
      %c0_11 = arith.constant 0 : index
      %c0_12 = arith.constant 0 : index
      %14 = vector.load %arg6[%c0_11, %c0_12] : memref<128x128xf32, #tpu.memory_space<vmem>>, vector<128x128xf32>
      tpu.vector_store %arg6[%c0_11, %c0_12], %13 {strides = array<i32>} : memref<128x128xf32, #tpu.memory_space<vmem>>, vector<128x128xf32>,
    } else {
    }
    %c0 = arith.constant 0 : index
    %c0_1 = arith.constant 0 : index
    %3 = vector.load %arg6[%c0, %c0_1] : memref<128x128xf32, #tpu.memory_space<vmem>>, vector<128x128xf32>
    %c0_2 = arith.constant 0 : index
    %c0_3 = arith.constant 0 : index
    %4 = vector.load %arg2[%c0_2, %c0_3] : memref<128x128xbf16, #tpu.memory_space<vmem>>, vector<128x128xbf16>
    %5 = arith.extf %4 : vector<128x128xbf16> to vector<128x128xf32>
    %c0_4 = arith.constant 0 : index
    %c0_5 = arith.constant 0 : index
    %6 = vector.load %arg3[%c0_4, %c0_5] : memref<128x128xf32, #tpu.memory_space<vmem>>, vector<128x128xf32>
    %cst = arith.constant dense<0.000000e+00> : vector<128x128xf32>
    %7 = tpu.matmul %5, %6, %cst {dimension_numbers = #tpu.dot_dimension_numbers<[1], [0], [0], [1], [0, 0, 1, 1], [], []>} : vector<128x128xf32>, vector<128x128xf32>, vector<128x128xf32> -> vector<128x128xf32>
    %8 = arith.addf %3, %7 : vector<128x128xf32>
    %c0_6 = arith.constant 0 : index
    %c0_7 = arith.constant 0 : index
    %9 = vector.load %arg6[%c0_6, %c0_7] : memref<128x128xf32, #tpu.memory_space<vmem>>, vector<128x128xf32>
    tpu.vector_store %arg6[%c0_6, %c0_7], %8 {strides = array<i32>} : memref<128x128xf32, #tpu.memory_space<vmem>>, vector<128x128xf32>,
    %c0_i32_8 = arith.constant 0 : i32
    %10 = arith.cmpi eq, %arg1, %c0_i32_8 : i32
    %11 = arith.extui %10 : i1 to i32
    %c0_i32_9 = arith.constant 0 : i32
    %12 = arith.cmpi ne, %11, %c0_i32_9 : i32
    scf.if %12 {
      %c0_10 = arith.constant 0 : index
      %c0_11 = arith.constant 0 : index
      %13 = vector.load %arg6[%c0_10, %c0_11] : memref<128x128xf32, #tpu.memory_space<vmem>>, vector<128x128xf32>
      %c0_12 = arith.constant 0 : index
      %c0_13 = arith.constant 0 : index
      %14 = vector.load %arg4[%c0_12, %c0_13] : memref<1x128xf32, #tpu.memory_space<vmem>>, vector<1x128xf32>
      %15 = vector.broadcast %14 : vector<1x128xf32> to vector<128x128xf32>
      %16 = arith.addf %13, %15 : vector<128x128xf32>
      %c0_14 = arith.constant 0 : index
      %c0_15 = arith.constant 0 : index
      %17 = vector.load %arg5[%c0_14, %c0_15] : memref<128x128xf32, #tpu.memory_space<vmem>>, vector<128x128xf32>
      tpu.vector_store %arg5[%c0_14, %c0_15], %16 {strides = array<i32>} : memref<128x128xf32, #tpu.memory_space<vmem>>, vector<128x128xf32>,
    } else {
    }
    return
  }
  func.func @transform_0(%arg0: i32, %arg1: i32) -> (i32, i32) {
    %c0_i32 = arith.constant 0 : i32
    return %arg0, %arg1 : i32, i32
  }
  func.func @transform_1(%arg0: i32, %arg1: i32) -> (i32, i32) {
    %c0_i32 = arith.constant 0 : i32
    %c0_i32_0 = arith.constant 0 : i32
    return %arg1, %c0_i32 : i32, i32
  }
  func.func @transform_2(%arg0: i32, %arg1: i32) -> (i32, i32) {
    %c0_i32 = arith.constant 0 : i32
    %c0_i32_0 = arith.constant 0 : i32
    %c0_i32_1 = arith.constant 0 : i32
    return %c0_i32, %c0_i32_0 : i32, i32
  }
  func.func @transform_3(%arg0: i32, %arg1: i32) -> (i32, i32) {
    %c0_i32 = arith.constant 0 : i32
    %c0_i32_0 = arith.constant 0 : i32
    return %arg0, %c0_i32 : i32, i32
  }
}

</mosaic_0001>

<llo_original>
// kernel: tpu_custom_call.1
$region0: #{tpu_custom_call.1}
  #allocation0 [shape = 'u32[]', space=smem, size = 0x4, offset = 0x4, fixed_abs, tag = 'smem constant byte address 0x4 - core index']
  #allocation1 [shape = 'u32[72,128]{1,0:T(1,128)}', space=vmem, size = 0x9000, scoped, tag = 'internal scratch']
  #allocation2 [shape = 'f32[128,128]{1,0:T(8,128)}', space=vmem, size = 0x10000, scoped, tag = 'scratch operand']
  %s0 = inlined_call_operand.hbm [shape: bf16[128,128], index: 0, kind: input, shape index: {}]
  %s1 = inlined_call_operand.hbm [shape: f32[128,128], index: 1, kind: input, shape index: {}]
  %s2 = inlined_call_operand.vmem [shape: f32[1,128], index: 2, kind: input, shape index: {}]
  %s3 = inlined_call_operand.hbm [shape: f32[128,128], index: 3, kind: output, shape index: {}]
  %s4 = sld [smem:[#allocation0]]
  $region38: #{tpu_custom_call.1} parent=0
    _
  %s6 = ssub.s32 1, %s4
  %s7 = scalar_select 0, %s6, %s4
  $region1: #{tpu_custom_call.1} parent=0
    #allocation3 [shape = 'u8[32768]{0}', space=vmem, size = 0x8000, scoped, tag = 'input window, operand 0, single buffered']
    #allocation4 [shape = 's32[1]{0}', space=sflag, size = 0x4, scoped, tag = 'scoped memory for tpu_custom_call.1']
    #allocation5 [shape = 's32[1]{0}', space=sflag, size = 0x4, scoped, tag = 'scoped memory for tpu_custom_call.1']
    #allocation6 [shape = 'u8[65536]{0}', space=vmem, size = 0x10000, scoped, tag = 'input window, operand 1, single buffered']
    #allocation7 [shape = 's32[1]{0}', space=sflag, size = 0x4, scoped, tag = 'scoped memory for tpu_custom_call.1']
    #allocation8 [shape = 'u8[65536]{0}', space=vmem, size = 0x10000, scoped, tag = 'output window, operand 0, single buffered']
    %8 = vsyncpa [#allocation4], 0
    %9 = vsyncpa [#allocation7], 0
    %10 = vsyncpa [#allocation5], 0
    // Predicated region
    $region2: #{tpu_custom_call.1} parent=1 // pred_check
      _
    $region3: #{tpu_custom_call.1} parent=1 // pred_check_branch
      %12 = sbr.rel (0) target = $region5
    $region4: #{tpu_custom_call.1} parent=1 // pred_region
      %14 = vsyncadd [#allocation4], 0
      %s15 = sshll.u32 %s0, 4
      %s16 = int_to_ptr.hbm [resolvable:$true] %s15
      %s17 = sshll.u32 [#allocation3], 4
      %s18 = int_to_ptr.vmem [resolvable:$true] %s17
      %23 = dma.hbm_to_vmem [thread:$0]  %s16, 1024, %s18, [#allocation4], 64, 64, 4
    $region5: #{tpu_custom_call.1} parent=1 // pred_fallthru
      _
    // Predicated region
    $region6: #{tpu_custom_call.1} parent=1 // pred_check
      _
    $region7: #{tpu_custom_call.1} parent=1 // pred_check_branch
      %25 = sbr.rel (0) target = $region9
    $region8: #{tpu_custom_call.1} parent=1 // pred_region
      %27 = vsyncadd [#allocation7], 0
      %s28 = sshll.u32 %s1, 4
      %s29 = int_to_ptr.hbm [resolvable:$true] %s28
      %s30 = sshll.u32 [#allocation6], 4
      %s31 = int_to_ptr.vmem [resolvable:$true] %s30
      %36 = dma.hbm_to_vmem [thread:$0]  %s29, 2048, %s31, [#allocation7], 128, 128, 8
    $region9: #{tpu_custom_call.1} parent=1 // pred_fallthru
      _
    // Predicated region
    $region10: #{tpu_custom_call.1} parent=1 // pred_check
      _
    $region11: #{tpu_custom_call.1} parent=1 // pred_check_branch
      %38 = sbr.rel (0) target = $region13
    $region12: #{tpu_custom_call.1} parent=1 // pred_region
      _
    $region13: #{tpu_custom_call.1} parent=1 // pred_fallthru
      _
    // Predicated region
    $region14: #{tpu_custom_call.1} parent=1 // pred_check
      _
    $region15: #{tpu_custom_call.1} parent=1 // pred_check_branch
      %40 = sbr.rel (0) target = $region17
    $region16: #{tpu_custom_call.1} parent=1 // pred_region
      %42 = dma.done [#allocation4], 1024
    $region17: #{tpu_custom_call.1} parent=1 // pred_fallthru
      _
    // Predicated region
    $region18: #{tpu_custom_call.1} parent=1 // pred_check
      _
    $region19: #{tpu_custom_call.1} parent=1 // pred_check_branch
      %44 = sbr.rel (0) target = $region21
    $region20: #{tpu_custom_call.1} parent=1 // pred_region
      %46 = dma.done [#allocation7], 2048
    $region21: #{tpu_custom_call.1} parent=1 // pred_fallthru
      _
    %p47 = scmp.eq.s32.totalorder 0, 0
    // Predicated region
    $region22: #{tpu_custom_call.1} parent=1 // pred_check
      %p48 = pneg %p47
    $region23: #{tpu_custom_call.1} parent=1 // pred_check_branch
      %50 = sbr.rel (%p48) target = $region25
    $region24: #{tpu_custom_call.1} parent=1 // pred_region
      %51 = vst [vmem:[#allocation2] sm:$0xff] 0.0
      %52 = vst [vmem:[#allocation2 + $0x8] sm:$0xff] 0.0
      %53 = vst [vmem:[#allocation2 + $0x10] sm:$0xff] 0.0
      %54 = vst [vmem:[#allocation2 + $0x18] sm:$0xff] 0.0
      %55 = vst [vmem:[#allocation2 + $0x20] sm:$0xff] 0.0
      %56 = vst [vmem:[#allocation2 + $0x28] sm:$0xff] 0.0
      %57 = vst [vmem:[#allocation2 + $0x30] sm:$0xff] 0.0
      %58 = vst [vmem:[#allocation2 + $0x38] sm:$0xff] 0.0
      %59 = vst [vmem:[#allocation2 + $0x40] sm:$0xff] 0.0
      %60 = vst [vmem:[#allocation2 + $0x48] sm:$0xff] 0.0
      %61 = vst [vmem:[#allocation2 + $0x50] sm:$0xff] 0.0
      %62 = vst [vmem:[#allocation2 + $0x58] sm:$0xff] 0.0
      %63 = vst [vmem:[#allocation2 + $0x60] sm:$0xff] 0.0
      %64 = vst [vmem:[#allocation2 + $0x68] sm:$0xff] 0.0
      %65 = vst [vmem:[#allocation2 + $0x70] sm:$0xff] 0.0
      %66 = vst [vmem:[#allocation2 + $0x78] sm:$0xff] 0.0
    $region25: #{tpu_custom_call.1} parent=1 // pred_fallthru
      _
    %v67 = vld [vmem:[#allocation2] sm:$0xff]
    %v68 = vld [vmem:[#allocation2 + $0x8] sm:$0xff]
    %v69 = vld [vmem:[#allocation2 + $0x10] sm:$0xff]
    %v70 = vld [vmem:[#allocation2 + $0x18] sm:$0xff]
    %v71 = vld [vmem:[#allocation2 + $0x20] sm:$0xff]
    %v72 = vld [vmem:[#allocation2 + $0x28] sm:$0xff]
    %v73 = vld [vmem:[#allocation2 + $0x30] sm:$0xff]
    %v74 = vld [vmem:[#allocation2 + $0x38] sm:$0xff]
    %v75 = vld [vmem:[#allocation2 + $0x40] sm:$0xff]
    %v76 = vld [vmem:[#allocation2 + $0x48] sm:$0xff]
    %v77 = vld [vmem:[#allocation2 + $0x50] sm:$0xff]
    %v78 = vld [vmem:[#allocation2 + $0x58] sm:$0xff]
    %v79 = vld [vmem:[#allocation2 + $0x60] sm:$0xff]
    %v80 = vld [vmem:[#allocation2 + $0x68] sm:$0xff]
    %v81 = vld [vmem:[#allocation2 + $0x70] sm:$0xff]
    %v82 = vld [vmem:[#allocation2 + $0x78] sm:$0xff]
    %v83 = vld [vmem:[#allocation3] sm:$0xf]
    %v84 = vld [vmem:[#allocation3 + $0x4] sm:$0xf]
    %v85 = vld [vmem:[#allocation3 + $0x8] sm:$0xf]
    %v86 = vld [vmem:[#allocation3 + $0xc] sm:$0xf]
    %v87 = vld [vmem:[#allocation3 + $0x10] sm:$0xf]
    %v88 = vld [vmem:[#allocation3 + $0x14] sm:$0xf]
    %v89 = vld [vmem:[#allocation3 + $0x18] sm:$0xf]
    %v90 = vld [vmem:[#allocation3 + $0x1c] sm:$0xf]
    %v91 = vld [vmem:[#allocation3 + $0x20] sm:$0xf]
    %v92 = vld [vmem:[#allocation3 + $0x24] sm:$0xf]
    %v93 = vld [vmem:[#allocation3 + $0x28] sm:$0xf]
    %v94 = vld [vmem:[#allocation3 + $0x2c] sm:$0xf]
    %v95 = vld [vmem:[#allocation3 + $0x30] sm:$0xf]
    %v96 = vld [vmem:[#allocation3 + $0x34] sm:$0xf]
    %v97 = vld [vmem:[#allocation3 + $0x38] sm:$0xf]
    %v98 = vld [vmem:[#allocation3 + $0x3c] sm:$0xf]
    %v99 = vunpack.c.l.bf16 %v83
    %v100 = vunpack.c.l.bf16 %v84
    %v101 = vunpack.c.l.bf16 %v85
    %v102 = vunpack.c.l.bf16 %v86
    %v103 = vunpack.c.l.bf16 %v87
    %v104 = vunpack.c.l.bf16 %v88
    %v105 = vunpack.c.l.bf16 %v89
    %v106 = vunpack.c.l.bf16 %v90
    %v107 = vunpack.c.l.bf16 %v91
    %v108 = vunpack.c.l.bf16 %v92
    %v109 = vunpack.c.l.bf16 %v93
    %v110 = vunpack.c.l.bf16 %v94
    %v111 = vunpack.c.l.bf16 %v95
    %v112 = vunpack.c.l.bf16 %v96
    %v113 = vunpack.c.l.bf16 %v97
    %v114 = vunpack.c.l.bf16 %v98
    %v115 = vld [vmem:[#allocation6] sm:$0xff]
    %v116 = vld [vmem:[#allocation6 + $0x8] sm:$0xff]
    %v117 = vld [vmem:[#allocation6 + $0x10] sm:$0xff]
    %v118 = vld [vmem:[#allocation6 + $0x18] sm:$0xff]
    %v119 = vld [vmem:[#allocation6 + $0x20] sm:$0xff]
    %v120 = vld [vmem:[#allocation6 + $0x28] sm:$0xff]
    %v121 = vld [vmem:[#allocation6 + $0x30] sm:$0xff]
    %v122 = vld [vmem:[#allocation6 + $0x38] sm:$0xff]
    %v123 = vld [vmem:[#allocation6 + $0x40] sm:$0xff]
    %v124 = vld [vmem:[#allocation6 + $0x48] sm:$0xff]
    %v125 = vld [vmem:[#allocation6 + $0x50] sm:$0xff]
    %v126 = vld [vmem:[#allocation6 + $0x58] sm:$0xff]
    %v127 = vld [vmem:[#allocation6 + $0x60] sm:$0xff]
    %v128 = vld [vmem:[#allocation6 + $0x68] sm:$0xff]
    %v129 = vld [vmem:[#allocation6 + $0x70] sm:$0xff]
    %v130 = vld [vmem:[#allocation6 + $0x78] sm:$0xff]
    %131 = vmatpush.msra.mxu0 %v130
    %132 = vmatpush.msra.mxu0 %v129
    %133 = vmatpush.msra.mxu0 %v128
    %134 = vmatpush.msra.mxu0 %v127
    %135 = vmatpush.msra.mxu0 %v126
    %136 = vmatpush.msra.mxu0 %v125
    %137 = vmatpush.msra.mxu0 %v124
    %138 = vmatpush.msra.mxu0 %v123
    %139 = vmatpush.msra.mxu0 %v122
    %140 = vmatpush.msra.mxu0 %v121
    %141 = vmatpush.msra.mxu0 %v120
    %142 = vmatpush.msra.mxu0 %v119
    %143 = vmatpush.msra.mxu0 %v118
    %144 = vmatpush.msra.mxu0 %v117
    %145 = vmatpush.msra.mxu0 %v116
    %146 = vmatpush.msra.mxu0 %v115
    %147 = vmatmul.f32.gmra.mxu0 %v99
    %v148 = vpop.f32.mrf.mxu0
    %v149 = vadd.f32 0.0, %v148
    %150 = vmatmul.f32.gmra.mxu0 %v100
    %v151 = vpop.f32.mrf.mxu0
    %v152 = vadd.f32 0.0, %v151
    %153 = vmatmul.f32.gmra.mxu0 %v101
    %v154 = vpop.f32.mrf.mxu0
    %v155 = vadd.f32 0.0, %v154
    %156 = vmatmul.f32.gmra.mxu0 %v102
    %v157 = vpop.f32.mrf.mxu0
    %v158 = vadd.f32 0.0, %v157
    %159 = vmatmul.f32.gmra.mxu0 %v103
    %v160 = vpop.f32.mrf.mxu0
    %v161 = vadd.f32 0.0, %v160
    %162 = vmatmul.f32.gmra.mxu0 %v104
    %v163 = vpop.f32.mrf.mxu0
    %v164 = vadd.f32 0.0, %v163
    %165 = vmatmul.f32.gmra.mxu0 %v105
    %v166 = vpop.f32.mrf.mxu0
    %v167 = vadd.f32 0.0, %v166
    %168 = vmatmul.f32.gmra.mxu0 %v106
    %v169 = vpop.f32.mrf.mxu0
    %v170 = vadd.f32 0.0, %v169
    %171 = vmatmul.f32.gmra.mxu0 %v107
    %v172 = vpop.f32.mrf.mxu0
    %v173 = vadd.f32 0.0, %v172
    %174 = vmatmul.f32.gmra.mxu0 %v108
    %v175 = vpop.f32.mrf.mxu0
    %v176 = vadd.f32 0.0, %v175
    %177 = vmatmul.f32.gmra.mxu0 %v109
    %v178 = vpop.f32.mrf.mxu0
    %v179 = vadd.f32 0.0, %v178
    %180 = vmatmul.f32.gmra.mxu0 %v110
    %v181 = vpop.f32.mrf.mxu0
    %v182 = vadd.f32 0.0, %v181
    %183 = vmatmul.f32.gmra.mxu0 %v111
    %v184 = vpop.f32.mrf.mxu0
    %v185 = vadd.f32 0.0, %v184
    %186 = vmatmul.f32.gmra.mxu0 %v112
    %v187 = vpop.f32.mrf.mxu0
    %v188 = vadd.f32 0.0, %v187
    %189 = vmatmul.f32.gmra.mxu0 %v113
    %v190 = vpop.f32.mrf.mxu0
    %v191 = vadd.f32 0.0, %v190
    %192 = vmatmul.f32.gmra.mxu0 %v114
    %v193 = vpop.f32.mrf.mxu0
    %v194 = vadd.f32 0.0, %v193
    %195 = vdwg.mxu0
    %v196 = vadd.f32 %v67, %v149
    %v197 = vadd.f32 %v68, %v152
    %v198 = vadd.f32 %v69, %v155
    %v199 = vadd.f32 %v70, %v158
    %v200 = vadd.f32 %v71, %v161
    %v201 = vadd.f32 %v72, %v164
    %v202 = vadd.f32 %v73, %v167
    %v203 = vadd.f32 %v74, %v170
    %v204 = vadd.f32 %v75, %v173
    %v205 = vadd.f32 %v76, %v176
    %v206 = vadd.f32 %v77, %v179
    %v207 = vadd.f32 %v78, %v182
    %v208 = vadd.f32 %v79, %v185
    %v209 = vadd.f32 %v80, %v188
    %v210 = vadd.f32 %v81, %v191
    %v211 = vadd.f32 %v82, %v194
    %212 = vst [vmem:[#allocation2] sm:$0xff] %v196
    %213 = vst [vmem:[#allocation2 + $0x8] sm:$0xff] %v197
    %214 = vst [vmem:[#allocation2 + $0x10] sm:$0xff] %v198
    %215 = vst [vmem:[#allocation2 + $0x18] sm:$0xff] %v199
    %216 = vst [vmem:[#allocation2 + $0x20] sm:$0xff] %v200
    %217 = vst [vmem:[#allocation2 + $0x28] sm:$0xff] %v201
    %218 = vst [vmem:[#allocation2 + $0x30] sm:$0xff] %v202
    %219 = vst [vmem:[#allocation2 + $0x38] sm:$0xff] %v203
    %220 = vst [vmem:[#allocation2 + $0x40] sm:$0xff] %v204
    %221 = vst [vmem:[#allocation2 + $0x48] sm:$0xff] %v205
    %222 = vst [vmem:[#allocation2 + $0x50] sm:$0xff] %v206
    %223 = vst [vmem:[#allocation2 + $0x58] sm:$0xff] %v207
    %224 = vst [vmem:[#allocation2 + $0x60] sm:$0xff] %v208
    %225 = vst [vmem:[#allocation2 + $0x68] sm:$0xff] %v209
    %226 = vst [vmem:[#allocation2 + $0x70] sm:$0xff] %v210
    %227 = vst [vmem:[#allocation2 + $0x78] sm:$0xff] %v211
    // Predicated region
    $region26: #{tpu_custom_call.1} parent=1 // pred_check
      %p228 = pneg %p47
    $region27: #{tpu_custom_call.1} parent=1 // pred_check_branch
      %230 = sbr.rel (%p228) target = $region29
    $region28: #{tpu_custom_call.1} parent=1 // pred_region
      %v231 = vld [vmem:[#allocation2] sm:$0xff]
      %v232 = vld [vmem:[#allocation2 + $0x8] sm:$0xff]
      %v233 = vld [vmem:[#allocation2 + $0x10] sm:$0xff]
      %v234 = vld [vmem:[#allocation2 + $0x18] sm:$0xff]
      %v235 = vld [vmem:[#allocation2 + $0x20] sm:$0xff]
      %v236 = vld [vmem:[#allocation2 + $0x28] sm:$0xff]
      %v237 = vld [vmem:[#allocation2 + $0x30] sm:$0xff]
      %v238 = vld [vmem:[#allocation2 + $0x38] sm:$0xff]
      %v239 = vld [vmem:[#allocation2 + $0x40] sm:$0xff]
      %v240 = vld [vmem:[#allocation2 + $0x48] sm:$0xff]
      %v241 = vld [vmem:[#allocation2 + $0x50] sm:$0xff]
      %v242 = vld [vmem:[#allocation2 + $0x58] sm:$0xff]
      %v243 = vld [vmem:[#allocation2 + $0x60] sm:$0xff]
      %v244 = vld [vmem:[#allocation2 + $0x68] sm:$0xff]
      %v245 = vld [vmem:[#allocation2 + $0x70] sm:$0xff]
      %v246 = vld [vmem:[#allocation2 + $0x78] sm:$0xff]
      %v247 = vld [vmem:[%s2] sm:$0x1]
      %v249 = vperm.slane %v247, 0
      %v251 = vadd.f32 %v231, %v249
      %v252 = vadd.f32 %v232, %v249
      %v253 = vadd.f32 %v233, %v249
      %v254 = vadd.f32 %v234, %v249
      %v255 = vadd.f32 %v235, %v249
      %v256 = vadd.f32 %v236, %v249
      %v257 = vadd.f32 %v237, %v249
      %v258 = vadd.f32 %v238, %v249
      %v259 = vadd.f32 %v239, %v249
      %v260 = vadd.f32 %v240, %v249
      %v261 = vadd.f32 %v241, %v249
      %v262 = vadd.f32 %v242, %v249
      %v263 = vadd.f32 %v243, %v249
      %v264 = vadd.f32 %v244, %v249
      %v265 = vadd.f32 %v245, %v249
      %v266 = vadd.f32 %v246, %v249
      %267 = vst [vmem:[#allocation8] sm:$0xff] %v251
      %268 = vst [vmem:[#allocation8 + $0x8] sm:$0xff] %v252
      %269 = vst [vmem:[#allocation8 + $0x10] sm:$0xff] %v253
      %270 = vst [vmem:[#allocation8 + $0x18] sm:$0xff] %v254
      %271 = vst [vmem:[#allocation8 + $0x20] sm:$0xff] %v255
      %272 = vst [vmem:[#allocation8 + $0x28] sm:$0xff] %v256
      %273 = vst [vmem:[#allocation8 + $0x30] sm:$0xff] %v257
      %274 = vst [vmem:[#allocation8 + $0x38] sm:$0xff] %v258
      %275 = vst [vmem:[#allocation8 + $0x40] sm:$0xff] %v259
      %276 = vst [vmem:[#allocation8 + $0x48] sm:$0xff] %v260
      %277 = vst [vmem:[#allocation8 + $0x50] sm:$0xff] %v261
      %278 = vst [vmem:[#allocation8 + $0x58] sm:$0xff] %v262
      %279 = vst [vmem:[#allocation8 + $0x60] sm:$0xff] %v263
      %280 = vst [vmem:[#allocation8 + $0x68] sm:$0xff] %v264
      %281 = vst [vmem:[#allocation8 + $0x70] sm:$0xff] %v265
      %282 = vst [vmem:[#allocation8 + $0x78] sm:$0xff] %v266
    $region29: #{tpu_custom_call.1} parent=1 // pred_fallthru
      _
    // Predicated region
    $region30: #{tpu_custom_call.1} parent=1 // pred_check
      _
    $region31: #{tpu_custom_call.1} parent=1 // pred_check_branch
      %284 = sbr.rel (0) target = $region33
    $region32: #{tpu_custom_call.1} parent=1 // pred_region
      %286 = vsyncadd [#allocation5], 0
      %s287 = sshll.u32 [#allocation8], 4
      %s288 = int_to_ptr.vmem [resolvable:$true] %s287
      %s289 = sshll.u32 %s3, 4
      %s290 = int_to_ptr.hbm [resolvable:$true] %s289
      %295 = dma.vmem_to_hbm [thread:$0]  %s288, 2048, %s290, [#allocation5], 128, 128, 8
    $region33: #{tpu_custom_call.1} parent=1 // pred_fallthru
      _
    // Predicated region
    $region34: #{tpu_custom_call.1} parent=1 // pred_check
      _
    $region35: #{tpu_custom_call.1} parent=1 // pred_check_branch
      %297 = sbr.rel (0) target = $region37
    $region36: #{tpu_custom_call.1} parent=1 // pred_region
      %299 = dma.done [#allocation5], 2048
    $region37: #{tpu_custom_call.1} parent=1 // pred_fallthru
      _
    %300 = vsyncpa [#allocation4], 1
    %301 = vsyncpa [#allocation7], 1
    %302 = vsyncpa [#allocation5], 1

</llo_original>
